<compile_context>
chip_gen: v5e
topology: v5e:2x2
jax: 0.10.0
libtpu: 0.0.40
codegen_flags: <defaults>
</compile_context>

<pallas_src>
from functools import partial

import jax
import jax.numpy as jnp
from jax.experimental import pallas as pl
from jax.experimental.pallas import tpu as pltpu


def _round_up(x, m):
    return ((x + m - 1) // m) * m


# ---------------------------------------------------------------------------
# Kernel 1: tiled conv matmul (bf16 x bf16 -> f32 acc) + per-M-tile BN stats.
# Grid: (nm, nn, nk) = (M tiles, Cout tiles, K tiles); K last & "arbitrary".
# ---------------------------------------------------------------------------
def _conv_stats_kernel(a_ref, b_ref, y_ref, sum_ref, ssq_ref, acc_ref):
    k = pl.program_id(2)

    @pl.when(k == 0)
    def _():
        acc_ref[...] = jnp.zeros_like(acc_ref)

    acc_ref[...] += jnp.dot(a_ref[...], b_ref[...],
                            preferred_element_type=jnp.float32)

    @pl.when(k == pl.num_programs(2) - 1)
    def _():
        acc = acc_ref[...]
        # bf16 storage for the intermediate; stats from the f32 accumulator.
        y_ref[...] = acc.astype(y_ref.dtype)
        sum_ref[...] = jnp.sum(acc, axis=0, keepdims=True)[None]
        ssq_ref[...] = jnp.sum(acc * acc, axis=0, keepdims=True)[None]


def conv_matmul_stats(patches, w_mat, *, tm, tn, tk):
    Mp, Kp = patches.shape
    _, Cp = w_mat.shape
    nm, nn, nk = Mp // tm, Cp // tn, Kp // tk

    cost = pl.CostEstimate(
        flops=2 * Mp * Kp * Cp,
        transcendentals=0,
        bytes_accessed=(Mp * Kp + Kp * Cp + Mp * Cp) * 2 + 2 * nm * Cp * 4,
    )

    # NOTE: the weight BlockSpec's index map is no longer constant across the
    # grid (it depends on j and k), so single-buffering it (pl.Buffered(1))
    # does not apply in the tiled form.
    y, psum, pssq = pl.pallas_call(
        _conv_stats_kernel,
        out_shape=(
            jax.ShapeDtypeStruct((Mp, Cp), jnp.bfloat16),
            jax.ShapeDtypeStruct((nm, 1, Cp), jnp.float32),
            jax.ShapeDtypeStruct((nm, 1, Cp), jnp.float32),
        ),
        grid_spec=pltpu.PrefetchScalarGridSpec(
            num_scalar_prefetch=0,
            grid=(nm, nn, nk),
            in_specs=[
                pl.BlockSpec((tm, tk), lambda i, j, k: (i, k)),
                pl.BlockSpec((tk, tn), lambda i, j, k: (k, j)),
            ],
            out_specs=(
                pl.BlockSpec((tm, tn), lambda i, j, k: (i, j)),
                pl.BlockSpec((1, 1, tn), lambda i, j, k: (i, 0, j)),
                pl.BlockSpec((1, 1, tn), lambda i, j, k: (i, 0, j)),
            ),
            scratch_shapes=[pltpu.VMEM((tm, tn), jnp.float32)],
        ),
        compiler_params=pltpu.CompilerParams(
            dimension_semantics=("parallel", "parallel", "arbitrary")),
        cost_estimate=cost,
    )(patches, w_mat)
    return y, psum, pssq


# ---------------------------------------------------------------------------
# Kernel 2 (fused epilogue): normalize + ReLU + unpad channels + transpose to
# (N, Cout, OH*OW). The final reshape to NCHW in the wrapper is a free
# contiguous split of the last dim.
# ---------------------------------------------------------------------------
def _bn_relu_nchw_kernel(y_ref, scale_ref, shift_ref, o_ref, *, cout):
    z = jnp.maximum(
        y_ref[...].astype(jnp.float32) * scale_ref[...] + shift_ref[...], 0.0)
    zt = z.T                               # (Cp, HW), 2-D XLU transpose
    o_ref[...] = zt[None, :cout, :]        # drop padded channels in-kernel


def bn_relu_to_nchw(y, scale, shift, *, n, hw, cout):
    Mp, Cp = y.shape
    return pl.pallas_call(
        partial(_bn_relu_nchw_kernel, cout=cout),
        out_shape=jax.ShapeDtypeStruct((n, cout, hw), jnp.float32),
        grid_spec=pltpu.PrefetchScalarGridSpec(
            num_scalar_prefetch=0,
            grid=(n,),
            in_specs=[
                pl.BlockSpec((hw, Cp), lambda b: (b, 0)),
                pl.BlockSpec((1, Cp), lambda b: (0, 0)),
                pl.BlockSpec((1, Cp), lambda b: (0, 0)),
            ],
            out_specs=pl.BlockSpec((1, cout, hw), lambda b: (b, 0, 0)),
        ),
        compiler_params=pltpu.CompilerParams(
            dimension_semantics=("parallel",)),
    )(y, scale, shift)


# Fallback epilogue (used only when OH*OW is not sublane-aligned or the fused
# per-batch block would be too large for VMEM): row-tiled normalize + ReLU,
# then unpad/transpose in XLA.
def _bn_relu_rows_kernel(y_ref, scale_ref, shift_ref, o_ref):
    o_ref[...] = jnp.maximum(
        y_ref[...].astype(jnp.float32) * scale_ref[...] + shift_ref[...], 0.0)


def bn_relu_rows(y, scale, shift, *, tm):
    Mp, Cp = y.shape
    return pl.pallas_call(
        _bn_relu_rows_kernel,
        out_shape=jax.ShapeDtypeStruct((Mp, Cp), jnp.float32),
        grid_spec=pltpu.PrefetchScalarGridSpec(
            num_scalar_prefetch=0,
            grid=(Mp // tm,),
            in_specs=[
                pl.BlockSpec((tm, Cp), lambda i: (i, 0)),
                pl.BlockSpec((1, Cp), lambda i: (0, 0)),
                pl.BlockSpec((1, Cp), lambda i: (0, 0)),
            ],
            out_specs=pl.BlockSpec((tm, Cp), lambda i: (i, 0)),
        ),
        compiler_params=pltpu.CompilerParams(
            dimension_semantics=("parallel",)),
    )(y, scale, shift)


# ---------------------------------------------------------------------------
# Glue: bf16 im2col (static unroll over the kernel window) and full forward.
# ---------------------------------------------------------------------------
def im2col_bf16(x, kh, kw, stride, padding):
    x = x.astype(jnp.bfloat16)             # 2-byte patch matrix end-to-end
    N, C, H, W = x.shape
    xp = jnp.pad(x, ((0, 0), (0, 0), (padding, padding), (padding, padding)))
    Hp, Wp = H + 2 * padding, W + 2 * padding
    OH = (Hp - kh) // stride + 1
    OW = (Wp - kw) // stride + 1
    cols = []
    for dy in range(kh):
        for dx in range(kw):
            cols.append(xp[:, :, dy:dy + stride * OH:stride,
                           dx:dx + stride * OW:stride])
    p = jnp.stack(cols, axis=2)            # (N, C, kh*kw, OH, OW)
    p = p.transpose(0, 3, 4, 1, 2)         # (N, OH, OW, C, kh*kw)
    p = p.reshape(N * OH * OW, C * kh * kw)
    return p, OH, OW


def basic_conv_forward(x, weight, bias, gamma, beta,
                       stride=1, padding=0, eps=1e-5, tm=256):
    # NOTE: `bias` is intentionally not added — train-mode BatchNorm subtracts
    # the batch mean of each channel, which absorbs a per-channel additive
    # bias exactly. Keeping it would be dead compute + a dead DMA stream.
    del bias
    N, Cin, H, W = x.shape
    Cout, _, kh, kw = weight.shape

    patches, OH, OW = im2col_bf16(x, kh, kw, stride, padding)
    M, K = patches.shape
    HW = OH * OW

    # Lane-dense output channels; tn=256 fills the 256-wide MXU on v6e/v7x.
    Cp = _round_up(Cout, 128)
    tn = 256 if Cp % 256 == 0 else 128
    # K tiling only when large (bounds per-step VMEM); small K stays one block
    # padded just to the bf16 sublane granule to keep the patch matrix small.
    if K <= 512:
        Kp = _round_up(K, 16)
        tk = Kp
    else:
        tk = 512
        Kp = _round_up(K, tk)
    # Keep >= 2 M tiles when possible so both v7x TensorCores get work.
    tm = max(8, min(tm, _round_up((M + 1) // 2, 8)))
    Mp = _round_up(M, tm)

    patches_p = jnp.pad(patches, ((0, Mp - M), (0, Kp - K)))   # already bf16
    w_mat = weight.reshape(Cout, K).T.astype(jnp.bfloat16)     # (K, Cout)
    w_p = jnp.pad(w_mat, ((0, Kp - K), (0, Cp - Cout)))
    gamma_p = jnp.pad(gamma.astype(jnp.float32), (0, Cp - Cout)).reshape(1, Cp)
    beta_p = jnp.pad(beta.astype(jnp.float32), (0, Cp - Cout)).reshape(1, Cp)

    # Pass 1: conv matmul + fused per-tile BN partial sums (from f32 acc).
    y, psum, pssq = conv_matmul_stats(patches_p, w_p, tm=tm, tn=tn, tk=tk)

    # BN finalize: O(nm*Cp) work — plain jnp, not worth a kernel launch.
    # (Zero-padded rows/channels contribute 0 to sum & sumsq; divide by true M.)
    inv_m = 1.0 / float(M)
    mean = jnp.sum(psum, axis=0) * inv_m          # (1, Cp)
    ex2 = jnp.sum(pssq, axis=0) * inv_m
    var = jnp.maximum(ex2 - mean * mean, 0.0)     # biased, train-mode BN
    scale = gamma_p * jax.lax.rsqrt(var + eps)
    shift = beta_p - mean * scale

    # Pass 2: normalize + ReLU (+ unpad + transpose) in one kernel.
    fused_ok = (HW % 8 == 0) and (HW * Cp * 8 <= 8 * 1024 * 1024)
    if fused_ok:
        out = bn_relu_to_nchw(y, scale, shift, n=N, hw=HW, cout=Cout)
        return out.reshape(N, Cout, OH, OW)       # free contiguous split
    yn = bn_relu_rows(y, scale, shift, tm=tm)
    return yn[:M, :Cout].reshape(N, OH, OW, Cout).transpose(0, 3, 1, 2)


# Pure-JAX reference for correctness checks.
def basic_conv_reference(x, weight, bias, gamma, beta,
                         stride=1, padding=0, eps=1e-5,
                         conv_dtype=jnp.float32):
    y = jax.lax.conv_general_dilated(
        x.astype(conv_dtype), weight.astype(conv_dtype),
        window_strides=(stride, stride),
        padding=[(padding, padding), (padding, padding)],
        dimension_numbers=("NCHW", "OIHW", "NCHW"),
        preferred_element_type=jnp.float32)
    y = y + bias.reshape(1, -1, 1, 1)
    mean = jnp.mean(y, axis=(0, 2, 3), keepdims=True)
    var = jnp.mean((y - mean) ** 2, axis=(0, 2, 3), keepdims=True)
    yn = (y - mean) * jax.lax.rsqrt(var + eps)
    yn = yn * gamma.reshape(1, -1, 1, 1) + beta.reshape(1, -1, 1, 1)
    return jnp.maximum(yn, 0.0)


if __name__ == "__main__":
    # BasicConv(in_channels=4, out_channels=8, kernel_size=3, stride=1, padding=1)
    N, Cin, H, W = 2, 4, 16, 16
    Cout, kh, kw = 8, 3, 3
    stride, padding = 1, 1

    key = jax.random.PRNGKey(0)
    kx, kw_key, kb_key = jax.random.split(key, 3)

    x = jax.random.normal(kx, (N, Cin, H, W), dtype=jnp.float32)

    fan_in = Cin * kh * kw
    bound = 1.0 / float(fan_in) ** 0.5
    weight = jax.random.uniform(kw_key, (Cout, Cin, kh, kw),
                                minval=-bound, maxval=bound,
                                dtype=jnp.float32)
    bias = jax.random.uniform(kb_key, (Cout,), minval=-bound, maxval=bound,
                              dtype=jnp.float32)
    gamma = jnp.ones((Cout,), dtype=jnp.float32)   # BatchNorm2d weight
    beta = jnp.zeros((Cout,), dtype=jnp.float32)   # BatchNorm2d bias

    out = basic_conv_forward(x, weight, bias, gamma, beta,
                             stride=stride, padding=padding)
    out = jax.block_until_ready(out)
    assert out.shape == (N, Cout, H, W)

    # Check vs a reference that also uses bf16 conv operands (f32 accum);
    # slightly looser than before because y is intentionally stored as bf16.
    ref_bf16 = basic_conv_reference(x, weight, bias, gamma, beta,
                                    stride=stride, padding=padding,
                                    conv_dtype=jnp.bfloat16)
    assert jnp.allclose(out, ref_bf16, atol=2e-2, rtol=2e-2), \
        float(jnp.max(jnp.abs(out - ref_bf16)))

    # Looser check vs the full-f32 PyTorch-equivalent reference.
    ref_f32 = basic_conv_reference(x, weight, bias, gamma, beta,
                                   stride=stride, padding=padding,
                                   conv_dtype=jnp.float32)
    assert jnp.allclose(out, ref_f32, atol=5e-2, rtol=5e-2), \
        float(jnp.max(jnp.abs(out - ref_f32)))

    print("KERNEL_OK")
</pallas_src>

<mosaic_0001>
module attributes {stable_mosaic.version = 11 : i64} {
  func.func @_conv_stats_kernel(%arg0: i32, %arg1: i32, %arg2: i32, %arg3: memref<256x48xbf16, #tpu.memory_space<vmem>>, %arg4: memref<48x128xbf16, #tpu.memory_space<vmem>>, %arg5: memref<256x128xbf16, #tpu.memory_space<vmem>>, %arg6: memref<1x1x128xf32, #tpu.memory_space<vmem>>, %arg7: memref<1x1x128xf32, #tpu.memory_space<vmem>>, %arg8: memref<256x128xf32, #tpu.memory_space<vmem>>) attributes {dimension_semantics = [#tpu.dimension_semantics<parallel>, #tpu.dimension_semantics<parallel>, #tpu.dimension_semantics<arbitrary>], iteration_bounds = array<i64: 2, 1, 1>, scalar_prefetch = 0 : i64, scratch_operands = 1 : i64, tpu.core_type = #tpu.core_type<tc>, window_params = [{transform_indices = @transform_0, window_bounds = array<i64: 256, 48>}, {transform_indices = @transform_1, window_bounds = array<i64: 48, 128>}, {transform_indices = @transform_2, window_bounds = array<i64: 256, 128>}, {transform_indices = @transform_3, window_bounds = array<i64: 1, 1, 128>}, {transform_indices = @transform_4, window_bounds = array<i64: 1, 1, 128>}]} {
    %c0_i32 = arith.constant 0 : i32
    %0 = arith.cmpi eq, %arg2, %c0_i32 : i32
    %1 = arith.extui %0 : i1 to i32
    %c0_i32_0 = arith.constant 0 : i32
    %2 = arith.cmpi ne, %1, %c0_i32_0 : i32
    scf.if %2 {
      %cst_10 = arith.constant 0.000000e+00 : f32
      %12 = vector.broadcast %cst_10 : f32 to vector<256x128xf32>
      %c0_11 = arith.constant 0 : index
      %c0_12 = arith.constant 0 : index
      %13 = vector.load %arg8[%c0_11, %c0_12] : memref<256x128xf32, #tpu.memory_space<vmem>>, vector<256x128xf32>
      tpu.vector_store %arg8[%c0_11, %c0_12], %12 {strides = array<i32>} : memref<256x128xf32, #tpu.memory_space<vmem>>, vector<256x128xf32>,
    } else {
    }
    %c0 = arith.constant 0 : index
    %c0_1 = arith.constant 0 : index
    %3 = vector.load %arg8[%c0, %c0_1] : memref<256x128xf32, #tpu.memory_space<vmem>>, vector<256x128xf32>
    %c0_2 = arith.constant 0 : index
    %c0_3 = arith.constant 0 : index
    %4 = vector.load %arg3[%c0_2, %c0_3] : memref<256x48xbf16, #tpu.memory_space<vmem>>, vector<256x48xbf16>
    %c0_4 = arith.constant 0 : index
    %c0_5 = arith.constant 0 : index
    %5 = vector.load %arg4[%c0_4, %c0_5] : memref<48x128xbf16, #tpu.memory_space<vmem>>, vector<48x128xbf16>
    %cst = arith.constant dense<0.000000e+00> : vector<256x128xf32>
    %6 = tpu.matmul %4, %5, %cst {dimension_numbers = #tpu.dot_dimension_numbers<[1], [0], [0], [1], [0, 0, 1, 1], [], []>} : vector<256x48xbf16>, vector<48x128xbf16>, vector<256x128xf32> -> vector<256x128xf32>
    %7 = arith.addf %3, %6 : vector<256x128xf32>
    %c0_6 = arith.constant 0 : index
    %c0_7 = arith.constant 0 : index
    %8 = vector.load %arg8[%c0_6, %c0_7] : memref<256x128xf32, #tpu.memory_space<vmem>>, vector<256x128xf32>
    tpu.vector_store %arg8[%c0_6, %c0_7], %7 {strides = array<i32>} : memref<256x128xf32, #tpu.memory_space<vmem>>, vector<256x128xf32>,
    %c0_i32_8 = arith.constant 0 : i32
    %9 = arith.cmpi eq, %arg2, %c0_i32_8 : i32
    %10 = arith.extui %9 : i1 to i32
    %c0_i32_9 = arith.constant 0 : i32
    %11 = arith.cmpi ne, %10, %c0_i32_9 : i32
    scf.if %11 {
      %c0_10 = arith.constant 0 : index
      %c0_11 = arith.constant 0 : index
      %12 = vector.load %arg8[%c0_10, %c0_11] : memref<256x128xf32, #tpu.memory_space<vmem>>, vector<256x128xf32>
      %13 = arith.truncf %12 : vector<256x128xf32> to vector<256x128xbf16>
      %c0_12 = arith.constant 0 : index
      %c0_13 = arith.constant 0 : index
      %14 = vector.load %arg5[%c0_12, %c0_13] : memref<256x128xbf16, #tpu.memory_space<vmem>>, vector<256x128xbf16>
      tpu.vector_store %arg5[%c0_12, %c0_13], %13 {strides = array<i32>} : memref<256x128xbf16, #tpu.memory_space<vmem>>, vector<256x128xbf16>,
      %cst_14 = arith.constant dense<0.000000e+00> : vector<128xf32>
      %15 = vector.multi_reduction <add>, %12, %cst_14 [0] : vector<256x128xf32> to vector<128xf32>
      %16 = vector.shape_cast %15 : vector<128xf32> to vector<1x128xf32>
      %17 = vector.shape_cast %16 : vector<1x128xf32> to vector<1x1x128xf32>
      %c0_15 = arith.constant 0 : index
      %c0_16 = arith.constant 0 : index
      %c0_17 = arith.constant 0 : index
      %18 = vector.load %arg6[%c0_15, %c0_16, %c0_17] : memref<1x1x128xf32, #tpu.memory_space<vmem>>, vector<1x1x128xf32>
      tpu.vector_store %arg6[%c0_15, %c0_16, %c0_17], %17 {strides = array<i32>} : memref<1x1x128xf32, #tpu.memory_space<vmem>>, vector<1x1x128xf32>,
      %19 = arith.mulf %12, %12 : vector<256x128xf32>
      %cst_18 = arith.constant dense<0.000000e+00> : vector<128xf32>
      %20 = vector.multi_reduction <add>, %19, %cst_18 [0] : vector<256x128xf32> to vector<128xf32>
      %21 = vector.shape_cast %20 : vector<128xf32> to vector<1x128xf32>
      %22 = vector.shape_cast %21 : vector<1x128xf32> to vector<1x1x128xf32>
      %c0_19 = arith.constant 0 : index
      %c0_20 = arith.constant 0 : index
      %c0_21 = arith.constant 0 : index
      %23 = vector.load %arg7[%c0_19, %c0_20, %c0_21] : memref<1x1x128xf32, #tpu.memory_space<vmem>>, vector<1x1x128xf32>
      tpu.vector_store %arg7[%c0_19, %c0_20, %c0_21], %22 {strides = array<i32>} : memref<1x1x128xf32, #tpu.memory_space<vmem>>, vector<1x1x128xf32>,
    } else {
    }
    return
  }
  func.func @transform_0(%arg0: i32, %arg1: i32, %arg2: i32) -> (i32, i32) {
    %c0_i32 = arith.constant 0 : i32
    return %arg0, %arg2 : i32, i32
  }
  func.func @transform_1(%arg0: i32, %arg1: i32, %arg2: i32) -> (i32, i32) {
    %c0_i32 = arith.constant 0 : i32
    return %arg2, %arg1 : i32, i32
  }
  func.func @transform_2(%arg0: i32, %arg1: i32, %arg2: i32) -> (i32, i32) {
    %c0_i32 = arith.constant 0 : i32
    return %arg0, %arg1 : i32, i32
  }
  func.func @transform_3(%arg0: i32, %arg1: i32, %arg2: i32) -> (i32, i32, i32) {
    %c0_i32 = arith.constant 0 : i32
    %c0_i32_0 = arith.constant 0 : i32
    return %arg0, %c0_i32, %arg1 : i32, i32, i32
  }
  func.func @transform_4(%arg0: i32, %arg1: i32, %arg2: i32) -> (i32, i32, i32) {
    %c0_i32 = arith.constant 0 : i32
    %c0_i32_0 = arith.constant 0 : i32
    return %arg0, %c0_i32, %arg1 : i32, i32, i32
  }
}

</mosaic_0001>

<llo_original>
// kernel: tpu_custom_call.1
$region0: #{tpu_custom_call.1}
  #allocation0 [shape = 'u32[]', space=smem, size = 0x4, offset = 0x4, fixed_abs, tag = 'smem constant byte address 0x4 - core index']
  #allocation1 [shape = 'u32[72,128]{1,0:T(1,128)}', space=vmem, size = 0x9000, scoped, tag = 'internal scratch']
  #allocation2 [shape = 'f32[256,128]{1,0:T(8,128)}', space=vmem, size = 0x20000, scoped, tag = 'scratch operand']
  %s0 = inlined_call_operand.vmem [shape: bf16[512,48], index: 0, kind: input, shape index: {}]
  %s1 = inlined_call_operand.vmem [shape: bf16[48,128], index: 1, kind: input, shape index: {}]
  %s2 = inlined_call_operand.hbm [shape: bf16[512,128], index: 2, kind: output, shape index: {0}]
  %s3 = inlined_call_operand.hbm [shape: f32[2,1,128], index: 3, kind: output, shape index: {1}]
  %s4 = inlined_call_operand.hbm [shape: f32[2,1,128], index: 4, kind: output, shape index: {2}]
  %5 = xla_tuple %s2, %s3, %s4
  %s6 = sld [smem:[#allocation0]]
  $region65: #{tpu_custom_call.1} parent=0
    _
  %s8 = ssub.s32 1, %s6
  %s9 = scalar_select 0, %s8, %s6
  $region1: #{tpu_custom_call.1} parent=0
    #allocation3 [shape = 'u8[131072]{0}', space=vmem, size = 0x20000, scoped, tag = 'output window, operand 0']
    #allocation4 [shape = 's32[2]{0}', space=sflag, size = 0x8, scoped, tag = 'scoped memory for tpu_custom_call.1']
    #allocation5 [shape = 'u8[1024]{0}', space=vmem, size = 0x400, scoped, tag = 'output window, operand 1']
    #allocation6 [shape = 's32[2]{0}', space=sflag, size = 0x8, scoped, tag = 'scoped memory for tpu_custom_call.1']
    #allocation7 [shape = 'u8[1024]{0}', space=vmem, size = 0x400, scoped, tag = 'output window, operand 2']
    %10 = vsyncpa [#allocation4], 0
    %s11 = scalar_lea.sflag [#allocation4], 1
    %12 = vsyncpa %s11, 0
    %13 = vsyncpa [#allocation6], 0
    %s14 = scalar_lea.sflag [#allocation6], 1
    %15 = vsyncpa %s14, 0
    loop: start=0, step=1, limit=4
    $region2: #{tpu_custom_call.1} parent=1 // loop_pre_header
      _
    $region3: #{tpu_custom_call.1} parent=1 // loop_header
      %s17 = sphi 0, %s21
      %p18 = scmp.ge.s32.totalorder %s17, 4
      %s24 = sphi 0, %s43
      %s25 = sphi 0, %s39
      %s26 = sphi 0, %s35
      %s27 = sphi 0, %s24
      %s28 = sphi 0, %s25
      %s29 = sphi 0, %s26
      %s30 = sphi 0, %s27
      %s31 = sphi 0, %s28
      %s32 = sphi 0, %s29
      %s48 = sphi 0, %s50
      %s51 = sphi 0, %s48
      %s52 = sphi 0, %s51
      %s68 = sphi 0, %s52
      %s76 = sphi 0, %s78
      %s79 = sphi 0, %s76
      %s80 = sphi 0, %s79
      %s96 = sphi 0, %s80
      %s104 = sphi 0, %s106
      %s107 = sphi 0, %s104
      %s108 = sphi 0, %s107
      %s124 = sphi 0, %s108
      %s132 = sphi 0, %s134
      %s135 = sphi 0, %s132
      %s136 = sphi 0, %s135
      %s152 = sphi 0, %s136
      %s160 = sphi 0, %s162
      %s163 = sphi 0, %s160
      %s164 = sphi 0, %s163
      %s180 = sphi 0, %s164
    $region4: #{tpu_custom_call.1} parent=1 // loop_header_branch
      %20 = sbr.rel (%p18) target = $region8
    $region5: #{tpu_custom_call.1} parent=1 // loop_body
      %s22 = ssub.s32 %s17, 1
      %s23 = ssub.s32 %s17, 2
      %s33 = sadd.s32 1, %s26
      %p34 = scmp.ge.s32.totalorder %s33, 1
      %s35 = scalar_select %p34, 0, %s33
      %s36 = sadd.s32 1, %s25
      %s37 = scalar_select %p34, %s36, %s25
      %p38 = scmp.ge.s32.totalorder %s37, 1
      %s39 = scalar_select %p38, 0, %s37
      %s40 = sadd.s32 1, %s24
      %s41 = scalar_select %p38, %s40, %s24
      %p42 = scmp.ge.s32.totalorder %s41, 2
      %s43 = scalar_select %p42, 0, %s41
      %s44 = ssub.s32 %s24, %s43
      %s45 = ssub.s32 %s26, %s35
      %s46 = sor.u32 %s44, %s45
      %p47 = scmp.eq.s32.totalorder %s46, 0
      %s49 = sadd.s32 %s48, 1
      %s50 = scalar_select %p47, %s48, %s49
      %p53 = pneg %p47
      %p54 = scmp.eq.s32.totalorder %s17, 1
      %p55 = por %p53, %p54
      %p56 = scmp.ne.s32.totalorder %s48, %s51
      %p57 = scmp.eq.s32.totalorder %s17, 0
      %p58 = por %p56, %p57
      %p59 = scmp.ne.s32.totalorder %s48, %s51
      %p60 = scmp.eq.s32.totalorder %s22, 1
      %p61 = por %p59, %p60
      %p62 = scmp.ne.s32.totalorder %s51, %s52
      %p63 = scmp.eq.s32.totalorder %s22, 0
      %p64 = por %p62, %p63
      %p65 = scmp.ne.s32.totalorder %s51, %s52
      %p66 = scmp.eq.s32.totalorder %s23, 1
      %p67 = por %p65, %p66
      %p69 = scmp.ne.s32.totalorder %s52, %s68
      %p70 = scmp.eq.s32.totalorder %s23, 0
      %p71 = por %p69, %p70
      %s72 = ssub.s32 %s26, %s35
      %s73 = ssub.s32 %s25, %s39
      %s74 = sor.u32 %s72, %s73
      %p75 = scmp.eq.s32.totalorder %s74, 0
      %s77 = sadd.s32 %s76, 1
      %s78 = scalar_select %p75, %s76, %s77
      %p81 = pneg %p75
      %p82 = scmp.eq.s32.totalorder %s17, 1
      %p83 = por %p81, %p82
      %p84 = scmp.ne.s32.totalorder %s76, %s79
      %p85 = scmp.eq.s32.totalorder %s17, 0
      %p86 = por %p84, %p85
      %p87 = scmp.ne.s32.totalorder %s76, %s79
      %p88 = scmp.eq.s32.totalorder %s22, 1
      %p89 = por %p87, %p88
      %p90 = scmp.ne.s32.totalorder %s79, %s80
      %p91 = scmp.eq.s32.totalorder %s22, 0
      %p92 = por %p90, %p91
      %p93 = scmp.ne.s32.totalorder %s79, %s80
      %p94 = scmp.eq.s32.totalorder %s23, 1
      %p95 = por %p93, %p94
      %p97 = scmp.ne.s32.totalorder %s80, %s96
      %p98 = scmp.eq.s32.totalorder %s23, 0
      %p99 = por %p97, %p98
      %s100 = ssub.s32 %s24, %s43
      %s101 = ssub.s32 %s25, %s39
      %s102 = sor.u32 %s100, %s101
      %p103 = scmp.eq.s32.totalorder %s102, 0
      %s105 = sadd.s32 %s104, 1
      %s106 = scalar_select %p103, %s104, %s105
      %p109 = pneg %p103
      %p110 = scmp.eq.s32.totalorder %s17, 1
      %p111 = por %p109, %p110
      %p112 = scmp.ne.s32.totalorder %s104, %s107
      %p113 = scmp.eq.s32.totalorder %s17, 0
      %p114 = por %p112, %p113
      %p115 = scmp.ne.s32.totalorder %s104, %s107
      %p116 = scmp.eq.s32.totalorder %s22, 1
      %p117 = por %p115, %p116
      %p118 = scmp.ne.s32.totalorder %s107, %s108
      %p119 = scmp.eq.s32.totalorder %s22, 0
      %p120 = por %p118, %p119
      %p121 = scmp.ne.s32.totalorder %s107, %s108
      %p122 = scmp.eq.s32.totalorder %s23, 1
      %p123 = por %p121, %p122
      %p125 = scmp.ne.s32.totalorder %s108, %s124
      %p126 = scmp.eq.s32.totalorder %s23, 0
      %p127 = por %p125, %p126
      %s128 = ssub.s32 %s24, %s43
      %s129 = ssub.s32 %s25, %s39
      %s130 = sor.u32 %s128, %s129
      %p131 = scmp.eq.s32.totalorder %s130, 0
      %s133 = sadd.s32 %s132, 1
      %s134 = scalar_select %p131, %s132, %s133
      %p137 = pneg %p131
      %p138 = scmp.eq.s32.totalorder %s17, 1
      %p139 = por %p137, %p138
      %p140 = scmp.ne.s32.totalorder %s132, %s135
      %p141 = scmp.eq.s32.totalorder %s17, 0
      %p142 = por %p140, %p141
      %p143 = scmp.ne.s32.totalorder %s132, %s135
      %p144 = scmp.eq.s32.totalorder %s22, 1
      %p145 = por %p143, %p144
      %p146 = scmp.ne.s32.totalorder %s135, %s136
      %p147 = scmp.eq.s32.totalorder %s22, 0
      %p148 = por %p146, %p147
      %p149 = scmp.ne.s32.totalorder %s135, %s136
      %p150 = scmp.eq.s32.totalorder %s23, 1
      %p151 = por %p149, %p150
      %p153 = scmp.ne.s32.totalorder %s136, %s152
      %p154 = scmp.eq.s32.totalorder %s23, 0
      %p155 = por %p153, %p154
      %s156 = ssub.s32 %s24, %s43
      %s157 = ssub.s32 %s25, %s39
      %s158 = sor.u32 %s156, %s157
      %p159 = scmp.eq.s32.totalorder %s158, 0
      %s161 = sadd.s32 %s160, 1
      %s162 = scalar_select %p159, %s160, %s161
      %p165 = pneg %p159
      %p166 = scmp.eq.s32.totalorder %s17, 1
      %p167 = por %p165, %p166
      %p168 = scmp.ne.s32.totalorder %s160, %s163
      %p169 = scmp.eq.s32.totalorder %s17, 0
      %p170 = por %p168, %p169
      %p171 = scmp.ne.s32.totalorder %s160, %s163
      %p172 = scmp.eq.s32.totalorder %s22, 1
      %p173 = por %p171, %p172
      %p174 = scmp.ne.s32.totalorder %s163, %s164
      %p175 = scmp.eq.s32.totalorder %s22, 0
      %p176 = por %p174, %p175
      %p177 = scmp.ne.s32.totalorder %s163, %s164
      %p178 = scmp.eq.s32.totalorder %s23, 1
      %p179 = por %p177, %p178
      %p181 = scmp.ne.s32.totalorder %s164, %s180
      %p182 = scmp.eq.s32.totalorder %s23, 0
      %p183 = por %p181, %p182
      %p184 = scmp.le.s32.totalorder 1, %s17
      %p185 = scmp.lt.s32.totalorder %s17, 3
      %p186 = pnand %p184, %p185
      %p187 = pneg %p186
      // Predicated region
      $region9: #{tpu_custom_call.1} parent=5 // pred_check
        _
      $region10: #{tpu_custom_call.1} parent=5 // pred_check_branch
        %189 = sbr.rel (%p186) target = $region12
      $region11: #{tpu_custom_call.1} parent=5 // pred_region
        %s190 = ssub.s32 %s17, 1
        // Predicated region
        $region13: #{tpu_custom_call.1} parent=11 // pred_check
          %p191 = pneg %p92
        $region14: #{tpu_custom_call.1} parent=11 // pred_check_branch
          %193 = sbr.rel (%p191) target = $region16
        $region15: #{tpu_custom_call.1} parent=11 // pred_region
          %s194 = smul.u32 6, %s29
          %p195 = scmp.lt.s32.totalorder %s194, 5
          %s196 = scalar_select %p195, %s194, 5
          %p197 = scmp.lt.s32.totalorder %s28, 0
          %s198 = scalar_select %p197, %s28, 0
          %s199 = sadd.s32 %s198, %s196
          %s200 = smul.addr %s199, 4
          %s201 = scalar_lea.vmem %s1, %s200
          %s202 = smul.u32 6, %s29
        $region16: #{tpu_custom_call.1} parent=11 // pred_fallthru
          _
      $region12: #{tpu_custom_call.1} parent=5 // pred_fallthru
        _
      %p203 = scmp.lt.s32.totalorder %s17, 2
      // Predicated region
      $region17: #{tpu_custom_call.1} parent=5 // pred_check
        %p204 = pneg %p203
      $region18: #{tpu_custom_call.1} parent=5 // pred_check_branch
        %206 = sbr.rel (%p204) target = $region20
      $region19: #{tpu_custom_call.1} parent=5 // pred_region
        // Predicated region
        $region21: #{tpu_custom_call.1} parent=19 // pred_check
          %p207 = pneg %p58
        $region22: #{tpu_custom_call.1} parent=19 // pred_check_branch
          %209 = sbr.rel (%p207) target = $region24
        $region23: #{tpu_custom_call.1} parent=19 // pred_region
          %s210 = smul.u32 32, %s24
          %p211 = scmp.lt.s32.totalorder %s210, 63
          %s212 = scalar_select %p211, %s210, 63
          %p213 = scmp.lt.s32.totalorder %s26, 0
          %s214 = scalar_select %p213, %s26, 0
          %s215 = sadd.s32 %s214, %s212
          %s216 = smul.addr %s215, 4
          %s217 = scalar_lea.vmem %s0, %s216
          %s218 = smul.u32 32, %s24
        $region24: #{tpu_custom_call.1} parent=19 // pred_fallthru
          _
      $region20: #{tpu_custom_call.1} parent=5 // pred_fallthru
        _
      %p219 = scmp.le.s32.totalorder 1, %s17
      %p220 = scmp.lt.s32.totalorder %s17, 3
      %p221 = pnand %p219, %p220
      %p222 = pneg %p221
      // Predicated region
      $region25: #{tpu_custom_call.1} parent=5 // pred_check
        _
      $region26: #{tpu_custom_call.1} parent=5 // pred_check_branch
        %224 = sbr.rel (%p221) target = $region28
      $region27: #{tpu_custom_call.1} parent=5 // pred_region
        %s225 = ssub.s32 %s17, 1
        %s226 = smul.u32 32, %s27
        %p227 = scmp.lt.s32.totalorder %s226, 63
        %s228 = scalar_select %p227, %s226, 63
        %p229 = scmp.lt.s32.totalorder %s29, 0
        %s230 = scalar_select %p229, %s29, 0
        %s231 = sadd.s32 %s230, %s228
        %s232 = smul.addr %s231, 4
        %s233 = scalar_lea.vmem %s0, %s232
        %p234 = pneg %p64
        %p235 = pneg %p61
        %s236 = smul.u32 6, %s29
        %p237 = scmp.lt.s32.totalorder %s236, 5
        %s238 = scalar_select %p237, %s236, 5
        %p239 = scmp.lt.s32.totalorder %s28, 0
        %s240 = scalar_select %p239, %s28, 0
        %s241 = sadd.s32 %s240, %s238
        %s242 = smul.addr %s241, 4
        %s243 = scalar_lea.vmem %s1, %s242
        %p244 = pneg %p92
        %p245 = pneg %p89
        %p246 = pneg %p120
        %p247 = pneg %p117
        %s248 = sand.u32 %s107, 1
        %s249 = scalar_lea.sflag [#allocation4], %s248
        %s250 = sand.u32 %s107, 1
        %s251 = smul.addr %s250, 128
        %s252 = scalar_lea.vmem [#allocation3], %s251
        %p253 = pneg %p148
        %p254 = pneg %p145
        %s255 = sand.u32 %s22, 1
        %s256 = scalar_lea.sflag [#allocation6], %s255
        %s257 = sand.u32 %s135, 1
        %s258 = scalar_lea.vmem [#allocation5], %s257
        %p259 = pneg %p176
        %p260 = pneg %p173
        %s261 = sand.u32 %s22, 1
        %s262 = scalar_lea.sflag [#allocation6], %s261
        %s263 = sand.u32 %s163, 1
        %s264 = scalar_lea.vmem [#allocation7], %s263
        %s265 = smul.u32 32, %s27
        %p266 = scmp.lt.s32.totalorder %s265, 63
        %s267 = scalar_select %p266, %s265, 63
        %p268 = scmp.lt.s32.totalorder %s29, 0
        %s269 = scalar_select %p268, %s29, 0
        %s270 = sadd.s32 %s269, %s267
        %s271 = smul.addr %s270, 4
        %s272 = scalar_lea.vmem %s0, %s271
        %s273 = smul.u32 32, %s27
        %s274 = smul.u32 6, %s29
        %p275 = scmp.lt.s32.totalorder %s274, 5
        %s276 = scalar_select %p275, %s274, 5
        %p277 = scmp.lt.s32.totalorder %s28, 0
        %s278 = scalar_select %p277, %s28, 0
        %s279 = sadd.s32 %s278, %s276
        %s280 = smul.addr %s279, 4
        %s281 = scalar_lea.vmem %s1, %s280
        %s282 = smul.u32 6, %s29
        %s283 = smul.u32 32, %s27
        %p285 = scmp.eq.s32.totalorder %s29, 0
        // Predicated region
        $region29: #{tpu_custom_call.1} parent=27 // pred_check
          %p286 = pneg %p285
        $region30: #{tpu_custom_call.1} parent=27 // pred_check_branch
          %288 = sbr.rel (%p286) target = $region32
        $region31: #{tpu_custom_call.1} parent=27 // pred_region
          %289 = vst [vmem:[#allocation2] sm:$0xff] 0.0
          %290 = vst [vmem:[#allocation2 + $0x8] sm:$0xff] 0.0
          %291 = vst [vmem:[#allocation2 + $0x10] sm:$0xff] 0.0
          %292 = vst [vmem:[#allocation2 + $0x18] sm:$0xff] 0.0
          %293 = vst [vmem:[#allocation2 + $0x20] sm:$0xff] 0.0
          %294 = vst [vmem:[#allocation2 + $0x28] sm:$0xff] 0.0
          %295 = vst [vmem:[#allocation2 + $0x30] sm:$0xff] 0.0
          %296 = vst [vmem:[#allocation2 + $0x38] sm:$0xff] 0.0
          %297 = vst [vmem:[#allocation2 + $0x40] sm:$0xff] 0.0
          %298 = vst [vmem:[#allocation2 + $0x48] sm:$0xff] 0.0
          %299 = vst [vmem:[#allocation2 + $0x50] sm:$0xff] 0.0
          %300 = vst [vmem:[#allocation2 + $0x58] sm:$0xff] 0.0
          %301 = vst [vmem:[#allocation2 + $0x60] sm:$0xff] 0.0
          %302 = vst [vmem:[#allocation2 + $0x68] sm:$0xff] 0.0
          %303 = vst [vmem:[#allocation2 + $0x70] sm:$0xff] 0.0
          %304 = vst [vmem:[#allocation2 + $0x78] sm:$0xff] 0.0
          %305 = vst [vmem:[#allocation2 + $0x80] sm:$0xff] 0.0
          %306 = vst [vmem:[#allocation2 + $0x88] sm:$0xff] 0.0
          %307 = vst [vmem:[#allocation2 + $0x90] sm:$0xff] 0.0
          %308 = vst [vmem:[#allocation2 + $0x98] sm:$0xff] 0.0
          %309 = vst [vmem:[#allocation2 + $0xa0] sm:$0xff] 0.0
          %310 = vst [vmem:[#allocation2 + $0xa8] sm:$0xff] 0.0
          %311 = vst [vmem:[#allocation2 + $0xb0] sm:$0xff] 0.0
          %312 = vst [vmem:[#allocation2 + $0xb8] sm:$0xff] 0.0
          %313 = vst [vmem:[#allocation2 + $0xc0] sm:$0xff] 0.0
          %314 = vst [vmem:[#allocation2 + $0xc8] sm:$0xff] 0.0
          %315 = vst [vmem:[#allocation2 + $0xd0] sm:$0xff] 0.0
          %316 = vst [vmem:[#allocation2 + $0xd8] sm:$0xff] 0.0
          %317 = vst [vmem:[#allocation2 + $0xe0] sm:$0xff] 0.0
          %318 = vst [vmem:[#allocation2 + $0xe8] sm:$0xff] 0.0
          %319 = vst [vmem:[#allocation2 + $0xf0] sm:$0xff] 0.0
          %320 = vst [vmem:[#allocation2 + $0xf8] sm:$0xff] 0.0
        $region32: #{tpu_custom_call.1} parent=27 // pred_fallthru
          _
        %v321 = vld [vmem:[#allocation2] sm:$0xff]
        %v322 = vld [vmem:[#allocation2 + $0x8] sm:$0xff]
        %v323 = vld [vmem:[#allocation2 + $0x10] sm:$0xff]
        %v324 = vld [vmem:[#allocation2 + $0x18] sm:$0xff]
        %v325 = vld [vmem:[#allocation2 + $0x20] sm:$0xff]
        %v326 = vld [vmem:[#allocation2 + $0x28] sm:$0xff]
        %v327 = vld [vmem:[#allocation2 + $0x30] sm:$0xff]
        %v328 = vld [vmem:[#allocation2 + $0x38] sm:$0xff]
        %v329 = vld [vmem:[#allocation2 + $0x40] sm:$0xff]
        %v330 = vld [vmem:[#allocation2 + $0x48] sm:$0xff]
        %v331 = vld [vmem:[#allocation2 + $0x50] sm:$0xff]
        %v332 = vld [vmem:[#allocation2 + $0x58] sm:$0xff]
        %v333 = vld [vmem:[#allocation2 + $0x60] sm:$0xff]
        %v334 = vld [vmem:[#allocation2 + $0x68] sm:$0xff]
        %v335 = vld [vmem:[#allocation2 + $0x70] sm:$0xff]
        %v336 = vld [vmem:[#allocation2 + $0x78] sm:$0xff]
        %v337 = vld [vmem:[#allocation2 + $0x80] sm:$0xff]
        %v338 = vld [vmem:[#allocation2 + $0x88] sm:$0xff]
        %v339 = vld [vmem:[#allocation2 + $0x90] sm:$0xff]
        %v340 = vld [vmem:[#allocation2 + $0x98] sm:$0xff]
        %v341 = vld [vmem:[#allocation2 + $0xa0] sm:$0xff]
        %v342 = vld [vmem:[#allocation2 + $0xa8] sm:$0xff]
        %v343 = vld [vmem:[#allocation2 + $0xb0] sm:$0xff]
        %v344 = vld [vmem:[#allocation2 + $0xb8] sm:$0xff]
        %v345 = vld [vmem:[#allocation2 + $0xc0] sm:$0xff]
        %v346 = vld [vmem:[#allocation2 + $0xc8] sm:$0xff]
        %v347 = vld [vmem:[#allocation2 + $0xd0] sm:$0xff]
        %v348 = vld [vmem:[#allocation2 + $0xd8] sm:$0xff]
        %v349 = vld [vmem:[#allocation2 + $0xe0] sm:$0xff]
        %v350 = vld [vmem:[#allocation2 + $0xe8] sm:$0xff]
        %v351 = vld [vmem:[#allocation2 + $0xf0] sm:$0xff]
        %v352 = vld [vmem:[#allocation2 + $0xf8] sm:$0xff]
        %v353 = vld [vmem:[%s272] sm:$0xf]
        %v354 = vld [vmem:[%s272 + $0x4] sm:$0xf]
        %v355 = vld [vmem:[%s272 + $0x8] sm:$0xf]
        %v356 = vld [vmem:[%s272 + $0xc] sm:$0xf]
        %v357 = vld [vmem:[%s272 + $0x10] sm:$0xf]
        %v358 = vld [vmem:[%s272 + $0x14] sm:$0xf]
        %v359 = vld [vmem:[%s272 + $0x18] sm:$0xf]
        %v360 = vld [vmem:[%s272 + $0x1c] sm:$0xf]
        %v361 = vld [vmem:[%s272 + $0x20] sm:$0xf]
        %v362 = vld [vmem:[%s272 + $0x24] sm:$0xf]
        %v363 = vld [vmem:[%s272 + $0x28] sm:$0xf]
        %v364 = vld [vmem:[%s272 + $0x2c] sm:$0xf]
        %v365 = vld [vmem:[%s272 + $0x30] sm:$0xf]
        %v366 = vld [vmem:[%s272 + $0x34] sm:$0xf]
        %v367 = vld [vmem:[%s272 + $0x38] sm:$0xf]
        %v368 = vld [vmem:[%s272 + $0x3c] sm:$0xf]
        %v369 = vld [vmem:[%s272 + $0x40] sm:$0xf]
        %v370 = vld [vmem:[%s272 + $0x44] sm:$0xf]
        %v371 = vld [vmem:[%s272 + $0x48] sm:$0xf]
        %v372 = vld [vmem:[%s272 + $0x4c] sm:$0xf]
        %v373 = vld [vmem:[%s272 + $0x50] sm:$0xf]
        %v374 = vld [vmem:[%s272 + $0x54] sm:$0xf]
        %v375 = vld [vmem:[%s272 + $0x58] sm:$0xf]
        %v376 = vld [vmem:[%s272 + $0x5c] sm:$0xf]
        %v377 = vld [vmem:[%s272 + $0x60] sm:$0xf]
        %v378 = vld [vmem:[%s272 + $0x64] sm:$0xf]
        %v379 = vld [vmem:[%s272 + $0x68] sm:$0xf]
        %v380 = vld [vmem:[%s272 + $0x6c] sm:$0xf]
        %v381 = vld [vmem:[%s272 + $0x70] sm:$0xf]
        %v382 = vld [vmem:[%s272 + $0x74] sm:$0xf]
        %v383 = vld [vmem:[%s272 + $0x78] sm:$0xf]
        %v384 = vld [vmem:[%s272 + $0x7c] sm:$0xf]
        %v385 = vld [vmem:[%s281] sm:$0xf]
        %v386 = vld [vmem:[%s281 + $0x4] sm:$0xf]
        %v387 = vld [vmem:[%s281 + $0x8] sm:$0xf]
        %v388 = vld [vmem:[%s281 + $0xc] sm:$0xf]
        %v389 = vld [vmem:[%s281 + $0x10] sm:$0xf]
        %v390 = vld [vmem:[%s281 + $0x14] sm:$0xf]
        %v423 = vunpack.c.l.b16 %v353
        %v424 = vunpack.c.l.b16 %v354
        %v425 = vunpack.c.l.b16 %v355
        %v426 = vunpack.c.l.b16 %v356
        %v427 = vunpack.c.l.b16 %v357
        %v428 = vunpack.c.l.b16 %v358
        %v429 = vunpack.c.l.b16 %v359
        %v430 = vunpack.c.l.b16 %v360
        %v431 = vunpack.c.l.b16 %v361
        %v432 = vunpack.c.l.b16 %v362
        %v433 = vunpack.c.l.b16 %v363
        %v434 = vunpack.c.l.b16 %v364
        %v435 = vunpack.c.l.b16 %v365
        %v436 = vunpack.c.l.b16 %v366
        %v437 = vunpack.c.l.b16 %v367
        %v438 = vunpack.c.l.b16 %v368
        %v439 = vunpack.c.l.b16 %v369
        %v440 = vunpack.c.l.b16 %v370
        %v441 = vunpack.c.l.b16 %v371
        %v442 = vunpack.c.l.b16 %v372
        %v443 = vunpack.c.l.b16 %v373
        %v444 = vunpack.c.l.b16 %v374
        %v445 = vunpack.c.l.b16 %v375
        %v446 = vunpack.c.l.b16 %v376
        %v447 = vunpack.c.l.b16 %v377
        %v448 = vunpack.c.l.b16 %v378
        %v449 = vunpack.c.l.b16 %v379
        %v450 = vunpack.c.l.b16 %v380
        %v451 = vunpack.c.l.b16 %v381
        %v452 = vunpack.c.l.b16 %v382
        %v453 = vunpack.c.l.b16 %v383
        %v454 = vunpack.c.l.b16 %v384
        %v455 = vpack.c.b16 %v424, %v423
        %v456 = vpack.c.b16 %v426, %v425
        %v457 = vpack.c.b16 %v428, %v427
        %v458 = vpack.c.b16 %v430, %v429
        %v459 = vpack.c.b16 %v432, %v431
        %v460 = vpack.c.b16 %v434, %v433
        %v461 = vpack.c.b16 %v436, %v435
        %v462 = vpack.c.b16 %v438, %v437
        %v463 = vpack.c.b16 %v440, %v439
        %v464 = vpack.c.b16 %v442, %v441
        %v465 = vpack.c.b16 %v444, %v443
        %v466 = vpack.c.b16 %v446, %v445
        %v467 = vpack.c.b16 %v448, %v447
        %v468 = vpack.c.b16 %v450, %v449
        %v469 = vpack.c.b16 %v452, %v451
        %v470 = vpack.c.b16 %v454, %v453
        %v477 = vunpack.c.l.b16 %v385
        %v478 = vunpack.c.l.b16 %v386
        %v479 = vunpack.c.l.b16 %v387
        %v480 = vunpack.c.l.b16 %v388
        %v481 = vunpack.c.l.b16 %v389
        %v482 = vunpack.c.l.b16 %v390
        %v483 = vpack.c.b16 %v478, %v477
        %v484 = vpack.c.b16 %v480, %v479
        %v485 = vpack.c.b16 %v482, %v481
        %vm489 = vcmask 392192
        %v491 = vsel %vm489, %v455, 0
        %v494 = vsel %vm489, %v456, 0
        %v497 = vsel %vm489, %v457, 0
        %v500 = vsel %vm489, %v458, 0
        %v503 = vsel %vm489, %v459, 0
        %v506 = vsel %vm489, %v460, 0
        %v509 = vsel %vm489, %v461, 0
        %v512 = vsel %vm489, %v462, 0
        %v515 = vsel %vm489, %v463, 0
        %v518 = vsel %vm489, %v464, 0
        %v521 = vsel %vm489, %v465, 0
        %v524 = vsel %vm489, %v466, 0
        %v527 = vsel %vm489, %v467, 0
        %v530 = vsel %vm489, %v468, 0
        %v533 = vsel %vm489, %v469, 0
        %v536 = vsel %vm489, %v470, 0
        %538 = vmatpush.bf16.msra.mxu0 0
        %539 = vmatpush.bf16.msra.mxu0 0
        %540 = vmatpush.bf16.msra.mxu0 0
        %541 = vmatpush.bf16.msra.mxu0 0
        %542 = vmatpush.bf16.msra.mxu0 0
        %543 = vmatpush.bf16.msra.mxu0 %v485
        %544 = vmatpush.bf16.msra.mxu0 %v484
        %545 = vmatpush.bf16.msra.mxu0 %v483
        %546 = vmatmul.bf16.gmra.mxu0 %v491
        %v547 = vpop.f32.mrf.mxu0
        %v548 = vadd.f32 0.0, %v547
        %v549 = vpop.f32.mrf.mxu0
        %v550 = vadd.f32 0.0, %v549
        %551 = vmatmul.bf16.gmra.mxu0 %v494
        %v552 = vpop.f32.mrf.mxu0
        %v553 = vadd.f32 0.0, %v552
        %v554 = vpop.f32.mrf.mxu0
        %v555 = vadd.f32 0.0, %v554
        %556 = vmatmul.bf16.gmra.mxu0 %v497
        %v557 = vpop.f32.mrf.mxu0
        %v558 = vadd.f32 0.0, %v557
        %v559 = vpop.f32.mrf.mxu0
        %v560 = vadd.f32 0.0, %v559
        %561 = vmatmul.bf16.gmra.mxu0 %v500
        %v562 = vpop.f32.mrf.mxu0
        %v563 = vadd.f32 0.0, %v562
        %v564 = vpop.f32.mrf.mxu0
        %v565 = vadd.f32 0.0, %v564
        %566 = vmatmul.bf16.gmra.mxu0 %v503
        %v567 = vpop.f32.mrf.mxu0
        %v568 = vadd.f32 0.0, %v567
        %v569 = vpop.f32.mrf.mxu0
        %v570 = vadd.f32 0.0, %v569
        %571 = vmatmul.bf16.gmra.mxu0 %v506
        %v572 = vpop.f32.mrf.mxu0
        %v573 = vadd.f32 0.0, %v572
        %v574 = vpop.f32.mrf.mxu0
        %v575 = vadd.f32 0.0, %v574
        %576 = vmatmul.bf16.gmra.mxu0 %v509
        %v577 = vpop.f32.mrf.mxu0
        %v578 = vadd.f32 0.0, %v577
        %v579 = vpop.f32.mrf.mxu0
        %v580 = vadd.f32 0.0, %v579
        %581 = vmatmul.bf16.gmra.mxu0 %v512
        %v582 = vpop.f32.mrf.mxu0
        %v583 = vadd.f32 0.0, %v582
        %v584 = vpop.f32.mrf.mxu0
        %v585 = vadd.f32 0.0, %v584
        %586 = vmatmul.bf16.gmra.mxu0 %v515
        %v587 = vpop.f32.mrf.mxu0
        %v588 = vadd.f32 0.0, %v587
        %v589 = vpop.f32.mrf.mxu0
        %v590 = vadd.f32 0.0, %v589
        %591 = vmatmul.bf16.gmra.mxu0 %v518
        %v592 = vpop.f32.mrf.mxu0
        %v593 = vadd.f32 0.0, %v592
        %v594 = vpop.f32.mrf.mxu0
        %v595 = vadd.f32 0.0, %v594
        %596 = vmatmul.bf16.gmra.mxu0 %v521
        %v597 = vpop.f32.mrf.mxu0
        %v598 = vadd.f32 0.0, %v597
        %v599 = vpop.f32.mrf.mxu0
        %v600 = vadd.f32 0.0, %v599
        %601 = vmatmul.bf16.gmra.mxu0 %v524
        %v602 = vpop.f32.mrf.mxu0
        %v603 = vadd.f32 0.0, %v602
        %v604 = vpop.f32.mrf.mxu0
        %v605 = vadd.f32 0.0, %v604
        %606 = vmatmul.bf16.gmra.mxu0 %v527
        %v607 = vpop.f32.mrf.mxu0
        %v608 = vadd.f32 0.0, %v607
        %v609 = vpop.f32.mrf.mxu0
        %v610 = vadd.f32 0.0, %v609
        %611 = vmatmul.bf16.gmra.mxu0 %v530
        %v612 = vpop.f32.mrf.mxu0
        %v613 = vadd.f32 0.0, %v612
        %v614 = vpop.f32.mrf.mxu0
        %v615 = vadd.f32 0.0, %v614
        %616 = vmatmul.bf16.gmra.mxu0 %v533
        %v617 = vpop.f32.mrf.mxu0
        %v618 = vadd.f32 0.0, %v617
        %v619 = vpop.f32.mrf.mxu0
        %v620 = vadd.f32 0.0, %v619
        %621 = vmatmul.bf16.gmra.mxu0 %v536
        %v622 = vpop.f32.mrf.mxu0
        %v623 = vadd.f32 0.0, %v622
        %v624 = vpop.f32.mrf.mxu0
        %v625 = vadd.f32 0.0, %v624
        %626 = vdwg.mxu0
        %v627 = vadd.f32 %v321, %v548
        %v628 = vadd.f32 %v322, %v550
        %v629 = vadd.f32 %v323, %v553
        %v630 = vadd.f32 %v324, %v555
        %v631 = vadd.f32 %v325, %v558
        %v632 = vadd.f32 %v326, %v560
        %v633 = vadd.f32 %v327, %v563
        %v634 = vadd.f32 %v328, %v565
        %v635 = vadd.f32 %v329, %v568
        %v636 = vadd.f32 %v330, %v570
        %v637 = vadd.f32 %v331, %v573
        %v638 = vadd.f32 %v332, %v575
        %v639 = vadd.f32 %v333, %v578
        %v640 = vadd.f32 %v334, %v580
        %v641 = vadd.f32 %v335, %v583
        %v642 = vadd.f32 %v336, %v585
        %v643 = vadd.f32 %v337, %v588
        %v644 = vadd.f32 %v338, %v590
        %v645 = vadd.f32 %v339, %v593
        %v646 = vadd.f32 %v340, %v595
        %v647 = vadd.f32 %v341, %v598
        %v648 = vadd.f32 %v342, %v600
        %v649 = vadd.f32 %v343, %v603
        %v650 = vadd.f32 %v344, %v605
        %v651 = vadd.f32 %v345, %v608
        %v652 = vadd.f32 %v346, %v610
        %v653 = vadd.f32 %v347, %v613
        %v654 = vadd.f32 %v348, %v615
        %v655 = vadd.f32 %v349, %v618
        %v656 = vadd.f32 %v350, %v620
        %v657 = vadd.f32 %v351, %v623
        %v658 = vadd.f32 %v352, %v625
        %659 = vst [vmem:[#allocation2] sm:$0xff] %v627
        %660 = vst [vmem:[#allocation2 + $0x8] sm:$0xff] %v628
        %661 = vst [vmem:[#allocation2 + $0x10] sm:$0xff] %v629
        %662 = vst [vmem:[#allocation2 + $0x18] sm:$0xff] %v630
        %663 = vst [vmem:[#allocation2 + $0x20] sm:$0xff] %v631
        %664 = vst [vmem:[#allocation2 + $0x28] sm:$0xff] %v632
        %665 = vst [vmem:[#allocation2 + $0x30] sm:$0xff] %v633
        %666 = vst [vmem:[#allocation2 + $0x38] sm:$0xff] %v634
        %667 = vst [vmem:[#allocation2 + $0x40] sm:$0xff] %v635
        %668 = vst [vmem:[#allocation2 + $0x48] sm:$0xff] %v636
        %669 = vst [vmem:[#allocation2 + $0x50] sm:$0xff] %v637
        %670 = vst [vmem:[#allocation2 + $0x58] sm:$0xff] %v638
        %671 = vst [vmem:[#allocation2 + $0x60] sm:$0xff] %v639
        %672 = vst [vmem:[#allocation2 + $0x68] sm:$0xff] %v640
        %673 = vst [vmem:[#allocation2 + $0x70] sm:$0xff] %v641
        %674 = vst [vmem:[#allocation2 + $0x78] sm:$0xff] %v642
        %675 = vst [vmem:[#allocation2 + $0x80] sm:$0xff] %v643
        %676 = vst [vmem:[#allocation2 + $0x88] sm:$0xff] %v644
        %677 = vst [vmem:[#allocation2 + $0x90] sm:$0xff] %v645
        %678 = vst [vmem:[#allocation2 + $0x98] sm:$0xff] %v646
        %679 = vst [vmem:[#allocation2 + $0xa0] sm:$0xff] %v647
        %680 = vst [vmem:[#allocation2 + $0xa8] sm:$0xff] %v648
        %681 = vst [vmem:[#allocation2 + $0xb0] sm:$0xff] %v649
        %682 = vst [vmem:[#allocation2 + $0xb8] sm:$0xff] %v650
        %683 = vst [vmem:[#allocation2 + $0xc0] sm:$0xff] %v651
        %684 = vst [vmem:[#allocation2 + $0xc8] sm:$0xff] %v652
        %685 = vst [vmem:[#allocation2 + $0xd0] sm:$0xff] %v653
        %686 = vst [vmem:[#allocation2 + $0xd8] sm:$0xff] %v654
        %687 = vst [vmem:[#allocation2 + $0xe0] sm:$0xff] %v655
        %688 = vst [vmem:[#allocation2 + $0xe8] sm:$0xff] %v656
        %689 = vst [vmem:[#allocation2 + $0xf0] sm:$0xff] %v657
        %690 = vst [vmem:[#allocation2 + $0xf8] sm:$0xff] %v658
        // Predicated region
        $region33: #{tpu_custom_call.1} parent=27 // pred_check
          %p691 = pneg %p285
        $region34: #{tpu_custom_call.1} parent=27 // pred_check_branch
          %693 = sbr.rel (%p691) target = $region36
        $region35: #{tpu_custom_call.1} parent=27 // pred_region
          %v694 = vld [vmem:[#allocation2] sm:$0xff]
          %v695 = vld [vmem:[#allocation2 + $0x8] sm:$0xff]
          %v696 = vld [vmem:[#allocation2 + $0x10] sm:$0xff]
          %v697 = vld [vmem:[#allocation2 + $0x18] sm:$0xff]
          %v698 = vld [vmem:[#allocation2 + $0x20] sm:$0xff]
          %v699 = vld [vmem:[#allocation2 + $0x28] sm:$0xff]
          %v700 = vld [vmem:[#allocation2 + $0x30] sm:$0xff]
          %v701 = vld [vmem:[#allocation2 + $0x38] sm:$0xff]
          %v702 = vld [vmem:[#allocation2 + $0x40] sm:$0xff]
          %v703 = vld [vmem:[#allocation2 + $0x48] sm:$0xff]
          %v704 = vld [vmem:[#allocation2 + $0x50] sm:$0xff]
          %v705 = vld [vmem:[#allocation2 + $0x58] sm:$0xff]
          %v706 = vld [vmem:[#allocation2 + $0x60] sm:$0xff]
          %v707 = vld [vmem:[#allocation2 + $0x68] sm:$0xff]
          %v708 = vld [vmem:[#allocation2 + $0x70] sm:$0xff]
          %v709 = vld [vmem:[#allocation2 + $0x78] sm:$0xff]
          %v710 = vld [vmem:[#allocation2 + $0x80] sm:$0xff]
          %v711 = vld [vmem:[#allocation2 + $0x88] sm:$0xff]
          %v712 = vld [vmem:[#allocation2 + $0x90] sm:$0xff]
          %v713 = vld [vmem:[#allocation2 + $0x98] sm:$0xff]
          %v714 = vld [vmem:[#allocation2 + $0xa0] sm:$0xff]
          %v715 = vld [vmem:[#allocation2 + $0xa8] sm:$0xff]
          %v716 = vld [vmem:[#allocation2 + $0xb0] sm:$0xff]
          %v717 = vld [vmem:[#allocation2 + $0xb8] sm:$0xff]
          %v718 = vld [vmem:[#allocation2 + $0xc0] sm:$0xff]
          %v719 = vld [vmem:[#allocation2 + $0xc8] sm:$0xff]
          %v720 = vld [vmem:[#allocation2 + $0xd0] sm:$0xff]
          %v721 = vld [vmem:[#allocation2 + $0xd8] sm:$0xff]
          %v722 = vld [vmem:[#allocation2 + $0xe0] sm:$0xff]
          %v723 = vld [vmem:[#allocation2 + $0xe8] sm:$0xff]
          %v724 = vld [vmem:[#allocation2 + $0xf0] sm:$0xff]
          %v725 = vld [vmem:[#allocation2 + $0xf8] sm:$0xff]
          %v726 = vpack.c.bf16 %v694, %v694
          %v727 = vpack.c.bf16 %v695, %v695
          %v728 = vpack.c.bf16 %v696, %v696
          %v729 = vpack.c.bf16 %v697, %v697
          %v730 = vpack.c.bf16 %v698, %v698
          %v731 = vpack.c.bf16 %v699, %v699
          %v732 = vpack.c.bf16 %v700, %v700
          %v733 = vpack.c.bf16 %v701, %v701
          %v734 = vpack.c.bf16 %v702, %v702
          %v735 = vpack.c.bf16 %v703, %v703
          %v736 = vpack.c.bf16 %v704, %v704
          %v737 = vpack.c.bf16 %v705, %v705
          %v738 = vpack.c.bf16 %v706, %v706
          %v739 = vpack.c.bf16 %v707, %v707
          %v740 = vpack.c.bf16 %v708, %v708
          %v741 = vpack.c.bf16 %v709, %v709
          %v742 = vpack.c.bf16 %v710, %v710
          %v743 = vpack.c.bf16 %v711, %v711
          %v744 = vpack.c.bf16 %v712, %v712
          %v745 = vpack.c.bf16 %v713, %v713
          %v746 = vpack.c.bf16 %v714, %v714
          %v747 = vpack.c.bf16 %v715, %v715
          %v748 = vpack.c.bf16 %v716, %v716
          %v749 = vpack.c.bf16 %v717, %v717
          %v750 = vpack.c.bf16 %v718, %v718
          %v751 = vpack.c.bf16 %v719, %v719
          %v752 = vpack.c.bf16 %v720, %v720
          %v753 = vpack.c.bf16 %v721, %v721
          %v754 = vpack.c.bf16 %v722, %v722
          %v755 = vpack.c.bf16 %v723, %v723
          %v756 = vpack.c.bf16 %v724, %v724
          %v757 = vpack.c.bf16 %v725, %v725
          %758 = vst [vmem:[%s252] sm:$0xf] %v726
          %759 = vst [vmem:[%s252 + $0x4] sm:$0xf] %v727
          %760 = vst [vmem:[%s252 + $0x8] sm:$0xf] %v728
          %761 = vst [vmem:[%s252 + $0xc] sm:$0xf] %v729
          %762 = vst [vmem:[%s252 + $0x10] sm:$0xf] %v730
          %763 = vst [vmem:[%s252 + $0x14] sm:$0xf] %v731
          %764 = vst [vmem:[%s252 + $0x18] sm:$0xf] %v732
          %765 = vst [vmem:[%s252 + $0x1c] sm:$0xf] %v733
          %766 = vst [vmem:[%s252 + $0x20] sm:$0xf] %v734
          %767 = vst [vmem:[%s252 + $0x24] sm:$0xf] %v735
          %768 = vst [vmem:[%s252 + $0x28] sm:$0xf] %v736
          %769 = vst [vmem:[%s252 + $0x2c] sm:$0xf] %v737
          %770 = vst [vmem:[%s252 + $0x30] sm:$0xf] %v738
          %771 = vst [vmem:[%s252 + $0x34] sm:$0xf] %v739
          %772 = vst [vmem:[%s252 + $0x38] sm:$0xf] %v740
          %773 = vst [vmem:[%s252 + $0x3c] sm:$0xf] %v741
          %774 = vst [vmem:[%s252 + $0x40] sm:$0xf] %v742
          %775 = vst [vmem:[%s252 + $0x44] sm:$0xf] %v743
          %776 = vst [vmem:[%s252 + $0x48] sm:$0xf] %v744
          %777 = vst [vmem:[%s252 + $0x4c] sm:$0xf] %v745
          %778 = vst [vmem:[%s252 + $0x50] sm:$0xf] %v746
          %779 = vst [vmem:[%s252 + $0x54] sm:$0xf] %v747
          %780 = vst [vmem:[%s252 + $0x58] sm:$0xf] %v748
          %781 = vst [vmem:[%s252 + $0x5c] sm:$0xf] %v749
          %782 = vst [vmem:[%s252 + $0x60] sm:$0xf] %v750
          %783 = vst [vmem:[%s252 + $0x64] sm:$0xf] %v751
          %784 = vst [vmem:[%s252 + $0x68] sm:$0xf] %v752
          %785 = vst [vmem:[%s252 + $0x6c] sm:$0xf] %v753
          %786 = vst [vmem:[%s252 + $0x70] sm:$0xf] %v754
          %787 = vst [vmem:[%s252 + $0x74] sm:$0xf] %v755
          %788 = vst [vmem:[%s252 + $0x78] sm:$0xf] %v756
          %789 = vst [vmem:[%s252 + $0x7c] sm:$0xf] %v757
          %v790 = vadd.f32 %v694, %v695
          %v791 = vadd.f32 %v790, %v696
          %v792 = vadd.f32 %v791, %v697
          %v793 = vadd.f32 %v792, %v698
          %v794 = vadd.f32 %v793, %v699
          %v795 = vadd.f32 %v794, %v700
          %v796 = vadd.f32 %v795, %v701
          %v797 = vadd.f32 %v796, %v702
          %v798 = vadd.f32 %v797, %v703
          %v799 = vadd.f32 %v798, %v704
          %v800 = vadd.f32 %v799, %v705
          %v801 = vadd.f32 %v800, %v706
          %v802 = vadd.f32 %v801, %v707
          %v803 = vadd.f32 %v802, %v708
          %v804 = vadd.f32 %v803, %v709
          %v805 = vadd.f32 %v804, %v710
          %v806 = vadd.f32 %v805, %v711
          %v807 = vadd.f32 %v806, %v712
          %v808 = vadd.f32 %v807, %v713
          %v809 = vadd.f32 %v808, %v714
          %v810 = vadd.f32 %v809, %v715
          %v811 = vadd.f32 %v810, %v716
          %v812 = vadd.f32 %v811, %v717
          %v813 = vadd.f32 %v812, %v718
          %v814 = vadd.f32 %v813, %v719
          %v815 = vadd.f32 %v814, %v720
          %v816 = vadd.f32 %v815, %v721
          %v817 = vadd.f32 %v816, %v722
          %v818 = vadd.f32 %v817, %v723
          %v819 = vadd.f32 %v818, %v724
          %v820 = vadd.f32 %v819, %v725
          %v821 = vrot.slane %v820, 4
          %v822 = vadd.f32 %v820, %v821
          %v823 = vrot.slane %v822, 2
          %v824 = vadd.f32 %v822, %v823
          %v825 = vrot.slane %v824, 1
          %v826 = vadd.f32 %v824, %v825
          %827 = vst [vmem:[%s258] sm:$0x1] %v826
          %v828 = vmul.f32 %v694, %v694
          %v829 = vmul.f32 %v695, %v695
          %v830 = vmul.f32 %v696, %v696
          %v831 = vmul.f32 %v697, %v697
          %v832 = vmul.f32 %v698, %v698
          %v833 = vmul.f32 %v699, %v699
          %v834 = vmul.f32 %v700, %v700
          %v835 = vmul.f32 %v701, %v701
          %v836 = vmul.f32 %v702, %v702
          %v837 = vmul.f32 %v703, %v703
          %v838 = vmul.f32 %v704, %v704
          %v839 = vmul.f32 %v705, %v705
          %v840 = vmul.f32 %v706, %v706
          %v841 = vmul.f32 %v707, %v707
          %v842 = vmul.f32 %v708, %v708
          %v843 = vmul.f32 %v709, %v709
          %v844 = vmul.f32 %v710, %v710
          %v845 = vmul.f32 %v711, %v711
          %v846 = vmul.f32 %v712, %v712
          %v847 = vmul.f32 %v713, %v713
          %v848 = vmul.f32 %v714, %v714
          %v849 = vmul.f32 %v715, %v715
          %v850 = vmul.f32 %v716, %v716
          %v851 = vmul.f32 %v717, %v717
          %v852 = vmul.f32 %v718, %v718
          %v853 = vmul.f32 %v719, %v719
          %v854 = vmul.f32 %v720, %v720
          %v855 = vmul.f32 %v721, %v721
          %v856 = vmul.f32 %v722, %v722
          %v857 = vmul.f32 %v723, %v723
          %v858 = vmul.f32 %v724, %v724
          %v859 = vmul.f32 %v725, %v725
          %v860 = vadd.f32 %v828, %v829
          %v861 = vadd.f32 %v860, %v830
          %v862 = vadd.f32 %v861, %v831
          %v863 = vadd.f32 %v862, %v832
          %v864 = vadd.f32 %v863, %v833
          %v865 = vadd.f32 %v864, %v834
          %v866 = vadd.f32 %v865, %v835
          %v867 = vadd.f32 %v866, %v836
          %v868 = vadd.f32 %v867, %v837
          %v869 = vadd.f32 %v868, %v838
          %v870 = vadd.f32 %v869, %v839
          %v871 = vadd.f32 %v870, %v840
          %v872 = vadd.f32 %v871, %v841
          %v873 = vadd.f32 %v872, %v842
          %v874 = vadd.f32 %v873, %v843
          %v875 = vadd.f32 %v874, %v844
          %v876 = vadd.f32 %v875, %v845
          %v877 = vadd.f32 %v876, %v846
          %v878 = vadd.f32 %v877, %v847
          %v879 = vadd.f32 %v878, %v848
          %v880 = vadd.f32 %v879, %v849
          %v881 = vadd.f32 %v880, %v850
          %v882 = vadd.f32 %v881, %v851
          %v883 = vadd.f32 %v882, %v852
          %v884 = vadd.f32 %v883, %v853
          %v885 = vadd.f32 %v884, %v854
          %v886 = vadd.f32 %v885, %v855
          %v887 = vadd.f32 %v886, %v856
          %v888 = vadd.f32 %v887, %v857
          %v889 = vadd.f32 %v888, %v858
          %v890 = vadd.f32 %v889, %v859
          %v891 = vrot.slane %v890, 4
          %v892 = vadd.f32 %v890, %v891
          %v893 = vrot.slane %v892, 2
          %v894 = vadd.f32 %v892, %v893
          %v895 = vrot.slane %v894, 1
          %v896 = vadd.f32 %v894, %v895
          %897 = vst [vmem:[%s264] sm:$0x1] %v896
        $region36: #{tpu_custom_call.1} parent=27 // pred_fallthru
          _
        %s898 = sand.u32 %s107, 1
        %s899 = scalar_lea.sflag [#allocation4], %s898
        %s900 = sand.u32 %s107, 1
        %s901 = smul.addr %s900, 128
        %s902 = scalar_lea.vmem [#allocation3], %s901
        %s903 = sand.u32 %s22, 1
        %s904 = scalar_lea.sflag [#allocation6], %s903
        %s905 = sand.u32 %s135, 1
        %s906 = scalar_lea.vmem [#allocation5], %s905
        %s907 = sand.u32 %s22, 1
        %s908 = scalar_lea.sflag [#allocation6], %s907
        %s909 = sand.u32 %s163, 1
        %s910 = scalar_lea.vmem [#allocation7], %s909
        // Predicated region
        $region37: #{tpu_custom_call.1} parent=27 // pred_check
          %p911 = pneg %p117
        $region38: #{tpu_custom_call.1} parent=27 // pred_check_branch
          %913 = sbr.rel (%p911) target = $region40
        $region39: #{tpu_custom_call.1} parent=27 // pred_region
          %s914 = smul.u32 32, %s27
          %916 = vsyncadd %s899, 0
          %s917 = sadd.s32 %s28, %s914
          %s918 = smul.addr %s917, 4
          %s919 = scalar_lea.hbm %s2, %s918
          %s920 = sshll.u32 %s902, 4
          %s921 = int_to_ptr.vmem [resolvable:$true] %s920
          %s922 = sshll.u32 %s919, 4
          %s923 = int_to_ptr.hbm [resolvable:$true] %s922
          %928 = dma.vmem_to_hbm [thread:$0]  %s921, 2048, %s923, %s899, 64, 64, 4
        $region40: #{tpu_custom_call.1} parent=27 // pred_fallthru
          _
        // Predicated region
        $region41: #{tpu_custom_call.1} parent=27 // pred_check
          %p929 = pneg %p145
        $region42: #{tpu_custom_call.1} parent=27 // pred_check_branch
          %931 = sbr.rel (%p929) target = $region44
        $region43: #{tpu_custom_call.1} parent=27 // pred_region
          %933 = vsyncadd %s904, 0
          %s934 = sadd.s32 %s28, %s27
          %s935 = scalar_lea.hbm %s3, %s934
          %s937 = sshll.u32 %s906, 4
          %s938 = int_to_ptr.vmem [resolvable:$true] %s937
          %s939 = sshll.u32 %s935, 4
          %s940 = int_to_ptr.hbm [resolvable:$true] %s939
          %942 = dma.vmem_to_hbm [thread:$0]  %s938, 16, %s940, %s904
        $region44: #{tpu_custom_call.1} parent=27 // pred_fallthru
          _
        // Predicated region
        $region45: #{tpu_custom_call.1} parent=27 // pred_check
          %p943 = pneg %p173
        $region46: #{tpu_custom_call.1} parent=27 // pred_check_branch
          %945 = sbr.rel (%p943) target = $region48
        $region47: #{tpu_custom_call.1} parent=27 // pred_region
          %947 = vsyncadd %s908, 0
          %s948 = sadd.s32 %s28, %s27
          %s949 = scalar_lea.hbm %s4, %s948
          %s951 = sshll.u32 %s910, 4
          %s952 = int_to_ptr.vmem [resolvable:$true] %s951
          %s953 = sshll.u32 %s949, 4
          %s954 = int_to_ptr.hbm [resolvable:$true] %s953
          %956 = dma.vmem_to_hbm [thread:$0]  %s952, 16, %s954, %s908
        $region48: #{tpu_custom_call.1} parent=27 // pred_fallthru
          _
      $region28: #{tpu_custom_call.1} parent=5 // pred_fallthru
        _
      %p957 = scmp.le.s32.totalorder 2, %s17
      // Predicated region
      $region49: #{tpu_custom_call.1} parent=5 // pred_check
        %p958 = pneg %p957
      $region50: #{tpu_custom_call.1} parent=5 // pred_check_branch
        %960 = sbr.rel (%p958) target = $region52
      $region51: #{tpu_custom_call.1} parent=5 // pred_region
        %s961 = ssub.s32 %s17, 2
        // Predicated region
        $region53: #{tpu_custom_call.1} parent=51 // pred_check
          %p962 = pneg %p123
        $region54: #{tpu_custom_call.1} parent=51 // pred_check_branch
          %964 = sbr.rel (%p962) target = $region56
        $region55: #{tpu_custom_call.1} parent=51 // pred_region
          %s965 = sand.u32 %s108, 1
          %s966 = scalar_lea.sflag [#allocation4], %s965
          %s967 = sand.u32 %s108, 1
          %s968 = smul.addr %s967, 128
          %s969 = scalar_lea.vmem [#allocation3], %s968
          %971 = dma.done %s966, 2048
        $region56: #{tpu_custom_call.1} parent=51 // pred_fallthru
          _
        // Predicated region
        $region57: #{tpu_custom_call.1} parent=51 // pred_check
          %p972 = pneg %p151
        $region58: #{tpu_custom_call.1} parent=51 // pred_check_branch
          %974 = sbr.rel (%p972) target = $region60
        $region59: #{tpu_custom_call.1} parent=51 // pred_region
          %s975 = sand.u32 %s23, 1
          %s976 = scalar_lea.sflag [#allocation6], %s975
          %s977 = sand.u32 %s136, 1
          %s978 = scalar_lea.vmem [#allocation5], %s977
          %980 = dma.done %s976, 16
        $region60: #{tpu_custom_call.1} parent=51 // pred_fallthru
          _
        // Predicated region
        $region61: #{tpu_custom_call.1} parent=51 // pred_check
          %p981 = pneg %p179
        $region62: #{tpu_custom_call.1} parent=51 // pred_check_branch
          %983 = sbr.rel (%p981) target = $region64
        $region63: #{tpu_custom_call.1} parent=51 // pred_region
          %s984 = sand.u32 %s23, 1
          %s985 = scalar_lea.sflag [#allocation6], %s984
          %s986 = sand.u32 %s164, 1
          %s987 = scalar_lea.vmem [#allocation7], %s986
          %989 = dma.done %s985, 16
        $region64: #{tpu_custom_call.1} parent=51 // pred_fallthru
          _
      $region52: #{tpu_custom_call.1} parent=5 // pred_fallthru
        _
    $region6: #{tpu_custom_call.1} parent=1 // loop_footer
      %s21 = sadd.s32 1, %s17
    $region7: #{tpu_custom_call.1} parent=1 // loop_footer_branch
      %16 = sbr.rel target = $region3
    $region8: #{tpu_custom_call.1} parent=1 // loop_exit
      _
    %990 = vsyncpa [#allocation4], 1
    %s991 = scalar_lea.sflag [#allocation4], 1
    %992 = vsyncpa %s991, 1
    %993 = vsyncpa [#allocation6], 1
    %s994 = scalar_lea.sflag [#allocation6], 1
    %995 = vsyncpa %s994, 1

</llo_original>
